<compile_context>
chip_gen: v7x
topology: tpu7x:2x2x1
jax: 0.10.0
libtpu: 0.0.40
codegen_flags: <defaults>
</compile_context>

<pallas_src>
import math
from functools import partial

import jax
import jax.numpy as jnp
from jax.experimental import pallas as pl
from jax.experimental.pallas import tpu as pltpu


# ----------------------------------------------------------------------------
# DynaLinear width rounding (matches the PyTorch helper)
# ----------------------------------------------------------------------------
def round_to_nearest(input_size, width_mult, num_heads, min_value=1):
    new_width_mult = round(num_heads * width_mult) * 1.0 / num_heads
    input_size = int(new_width_mult * input_size)
    return max(min_value, input_size)


# ----------------------------------------------------------------------------
# Fused kernel: y = LayerNorm(dropout(x @ W + b) + residual)
# Dropout is identity in eval mode.
# TODO(synk): training-mode dropout (pltpu.prng_seed + stateful_bernoulli) is
#             not implemented; forward here corresponds to model.eval().
# ----------------------------------------------------------------------------
def _bert_output_kernel(x_ref, w_ref, b_ref, res_ref, g_ref, beta_ref,
                        o_ref, *, eps):
    # dense: matmul in input dtype (bf16 in production), f32 accumulate
    h = jnp.dot(x_ref[...], w_ref[...], preferred_element_type=jnp.float32)
    h = h + b_ref[...].astype(jnp.float32)
    # dropout -> identity (eval)
    # residual add
    h = h + res_ref[...].astype(jnp.float32)
    # LayerNorm over hidden dim (f32 statistics)
    mean = jnp.mean(h, axis=-1, keepdims=True)
    var = jnp.mean(jnp.square(h - mean), axis=-1, keepdims=True)
    h = (h - mean) * jax.lax.rsqrt(var + eps)
    h = h * g_ref[...].astype(jnp.float32) + beta_ref[...].astype(jnp.float32)
    o_ref[...] = h.astype(o_ref.dtype)


def _pick_row_tile(m):
    """Largest convenient row tile that divides M (multiple of 8 if possible)."""
    for t in (512, 256, 128, 64, 32, 16, 8):
        if m % t == 0:
            return t
    return m


def bert_output_2d(x2d, weight_t, bias, residual2d, ln_gamma, ln_beta,
                   *, eps=1e-12, tm=None):
    """x2d: [M, K]; weight_t: [K, H]; residual2d: [M, H]; returns [M, H]."""
    M, K = x2d.shape
    H = weight_t.shape[1]
    if tm is None:
        tm = _pick_row_tile(M)
    assert M % tm == 0
    grid = (M // tm,)

    return pl.pallas_call(
        partial(_bert_output_kernel, eps=eps),
        out_shape=jax.ShapeDtypeStruct((M, H), x2d.dtype),
        grid_spec=pltpu.PrefetchScalarGridSpec(
            num_scalar_prefetch=0,
            grid=grid,
            in_specs=[
                pl.BlockSpec((tm, K), lambda i: (i, 0)),   # hidden_states tile
                pl.BlockSpec((K, H), lambda i: (0, 0)),    # dense weight (transposed)
                pl.BlockSpec((1, H), lambda i: (0, 0)),    # dense bias
                pl.BlockSpec((tm, H), lambda i: (i, 0)),   # residual tile
                pl.BlockSpec((1, H), lambda i: (0, 0)),    # LN gamma
                pl.BlockSpec((1, H), lambda i: (0, 0)),    # LN beta
            ],
            out_specs=pl.BlockSpec((tm, H), lambda i: (i, 0)),
        ),
        compiler_params=pltpu.CompilerParams(
            dimension_semantics=("parallel",)),
    )(x2d, weight_t, bias, residual2d, ln_gamma, ln_beta)


# ----------------------------------------------------------------------------
# Full BertOutput forward (DynaLinear width slicing done at trace time)
# ----------------------------------------------------------------------------
def bert_output(hidden_states, input_tensor, params, *,
                width_mult=1.0, num_heads=4, eps=1e-12):
    """hidden_states: [B, S, intermediate]; input_tensor: [B, S, hidden]."""
    B, S, K_max = hidden_states.shape
    H = input_tensor.shape[-1]

    # DynaLinear with dyna_dim=[True, False]: slice in_features by width_mult.
    k_eff = round_to_nearest(K_max, width_mult, num_heads)
    x2d = hidden_states.reshape(B * S, K_max)[:, :k_eff]
    w_t = params["dense_w"][:k_eff, :]          # [K_eff, H]
    res2d = input_tensor.reshape(B * S, H)

    out2d = bert_output_2d(
        x2d, w_t, params["dense_b"], res2d,
        params["ln_g"], params["ln_b"], eps=eps)
    return out2d.reshape(B, S, H)


# pure-JAX reference for a sanity check
def _reference(hidden_states, input_tensor, params, *,
               width_mult=1.0, num_heads=4, eps=1e-12):
    K_max = hidden_states.shape[-1]
    k_eff = round_to_nearest(K_max, width_mult, num_heads)
    h = hidden_states[..., :k_eff] @ params["dense_w"][:k_eff, :] + params["dense_b"][0]
    h = h + input_tensor
    mean = jnp.mean(h, axis=-1, keepdims=True)
    var = jnp.mean((h - mean) ** 2, axis=-1, keepdims=True)
    h = (h - mean) / jnp.sqrt(var + eps)
    return h * params["ln_g"][0] + params["ln_b"][0]


if __name__ == "__main__":
    # small config: batch=2, seq=8, hidden=32, intermediate=128, heads=4
    B, S, H, I, NH = 2, 8, 32, 128, 4
    key = jax.random.PRNGKey(0)
    ks = jax.random.split(key, 6)

    params = {
        "dense_w": (0.02 * jax.random.normal(ks[0], (I, H))).astype(jnp.float32),
        "dense_b": (0.02 * jax.random.normal(ks[1], (1, H))).astype(jnp.float32),
        "ln_g": jnp.ones((1, H), jnp.float32),
        "ln_b": jnp.zeros((1, H), jnp.float32),
    }

    hidden_states = jax.random.normal(ks[2], (B, S, I), jnp.float32)
    input_tensor = jax.random.normal(ks[3], (B, S, H), jnp.float32)

    # full width (width_mult = 1.0)
    out = bert_output(hidden_states, input_tensor, params,
                      width_mult=1.0, num_heads=NH)
    jax.block_until_ready(out)
    ref = _reference(hidden_states, input_tensor, params,
                     width_mult=1.0, num_heads=NH)
    assert out.shape == (B, S, H)
    assert jnp.allclose(out, ref, atol=1e-4, rtol=1e-4)

    # reduced width (DynaLinear in_features slicing, width_mult = 0.75)
    out_w = bert_output(hidden_states, input_tensor, params,
                        width_mult=0.75, num_heads=NH)
    jax.block_until_ready(out_w)
    ref_w = _reference(hidden_states, input_tensor, params,
                       width_mult=0.75, num_heads=NH)
    assert jnp.allclose(out_w, ref_w, atol=1e-4, rtol=1e-4)

    print("KERNEL_OK")
</pallas_src>

<mosaic_0001>
module attributes {stable_mosaic.version = 11 : i64} {
  func.func @_bert_output_kernel(%arg0: i32, %arg1: memref<16x128xf32, #tpu.memory_space<vmem>>, %arg2: memref<128x32xf32, #tpu.memory_space<vmem>>, %arg3: memref<1x32xf32, #tpu.memory_space<vmem>>, %arg4: memref<16x32xf32, #tpu.memory_space<vmem>>, %arg5: memref<1x32xf32, #tpu.memory_space<vmem>>, %arg6: memref<1x32xf32, #tpu.memory_space<vmem>>, %arg7: memref<16x32xf32, #tpu.memory_space<vmem>>) attributes {dimension_semantics = [#tpu.dimension_semantics<parallel>], iteration_bounds = array<i64: 1>, scalar_prefetch = 0 : i64, scratch_operands = 0 : i64, tpu.core_type = #tpu.core_type<tc>, window_params = [{transform_indices = @transform_0, window_bounds = array<i64: 16, 128>}, {pipeline_mode = #tpu.pipeline_mode<synchronous>, transform_indices = @transform_1, window_bounds = array<i64: 128, 32>}, {pipeline_mode = #tpu.pipeline_mode<synchronous>, transform_indices = @transform_2, window_bounds = array<i64: 1, 32>}, {transform_indices = @transform_3, window_bounds = array<i64: 16, 32>}, {pipeline_mode = #tpu.pipeline_mode<synchronous>, transform_indices = @transform_4, window_bounds = array<i64: 1, 32>}, {pipeline_mode = #tpu.pipeline_mode<synchronous>, transform_indices = @transform_5, window_bounds = array<i64: 1, 32>}, {transform_indices = @transform_6, window_bounds = array<i64: 16, 32>}]} {
    %c0 = arith.constant 0 : index
    %c0_0 = arith.constant 0 : index
    %0 = vector.load %arg1[%c0, %c0_0] : memref<16x128xf32, #tpu.memory_space<vmem>>, vector<16x128xf32>
    %c0_1 = arith.constant 0 : index
    %c0_2 = arith.constant 0 : index
    %1 = vector.load %arg2[%c0_1, %c0_2] : memref<128x32xf32, #tpu.memory_space<vmem>>, vector<128x32xf32>
    %cst = arith.constant dense<0.000000e+00> : vector<16x32xf32>
    %2 = tpu.matmul %0, %1, %cst {dimension_numbers = #tpu.dot_dimension_numbers<[1], [0], [0], [1], [0, 0, 1, 1], [], []>} : vector<16x128xf32>, vector<128x32xf32>, vector<16x32xf32> -> vector<16x32xf32>
    %c0_3 = arith.constant 0 : index
    %c0_4 = arith.constant 0 : index
    %3 = vector.load %arg3[%c0_3, %c0_4] : memref<1x32xf32, #tpu.memory_space<vmem>>, vector<1x32xf32>
    %4 = vector.broadcast %3 : vector<1x32xf32> to vector<16x32xf32>
    %5 = arith.addf %2, %4 : vector<16x32xf32>
    %c0_5 = arith.constant 0 : index
    %c0_6 = arith.constant 0 : index
    %6 = vector.load %arg4[%c0_5, %c0_6] : memref<16x32xf32, #tpu.memory_space<vmem>>, vector<16x32xf32>
    %7 = arith.addf %5, %6 : vector<16x32xf32>
    %cst_7 = arith.constant dense<0.000000e+00> : vector<16xf32>
    %8 = vector.multi_reduction <add>, %7, %cst_7 [1] : vector<16x32xf32> to vector<16xf32>
    %9 = vector.shape_cast %8 : vector<16xf32> to vector<16x1xf32>
    %cst_8 = arith.constant 3.200000e+01 : f32
    %10 = vector.broadcast %cst_8 : f32 to vector<16x1xf32>
    %11 = arith.divf %9, %10 : vector<16x1xf32>
    %12 = vector.broadcast %11 : vector<16x1xf32> to vector<16x32xf32>
    %13 = arith.subf %7, %12 : vector<16x32xf32>
    %14 = arith.mulf %13, %13 : vector<16x32xf32>
    %cst_9 = arith.constant dense<0.000000e+00> : vector<16xf32>
    %15 = vector.multi_reduction <add>, %14, %cst_9 [1] : vector<16x32xf32> to vector<16xf32>
    %16 = vector.shape_cast %15 : vector<16xf32> to vector<16x1xf32>
    %cst_10 = arith.constant 3.200000e+01 : f32
    %17 = vector.broadcast %cst_10 : f32 to vector<16x1xf32>
    %18 = arith.divf %16, %17 : vector<16x1xf32>
    %19 = vector.broadcast %11 : vector<16x1xf32> to vector<16x32xf32>
    %20 = arith.subf %7, %19 : vector<16x32xf32>
    %cst_11 = arith.constant 9.99999996E-13 : f32
    %21 = vector.broadcast %cst_11 : f32 to vector<16x1xf32>
    %22 = arith.addf %18, %21 : vector<16x1xf32>
    %23 = math.rsqrt %22 : vector<16x1xf32>
    %24 = vector.broadcast %23 : vector<16x1xf32> to vector<16x32xf32>
    %25 = arith.mulf %20, %24 : vector<16x32xf32>
    %c0_12 = arith.constant 0 : index
    %c0_13 = arith.constant 0 : index
    %26 = vector.load %arg5[%c0_12, %c0_13] : memref<1x32xf32, #tpu.memory_space<vmem>>, vector<1x32xf32>
    %27 = vector.broadcast %26 : vector<1x32xf32> to vector<16x32xf32>
    %28 = arith.mulf %25, %27 : vector<16x32xf32>
    %c0_14 = arith.constant 0 : index
    %c0_15 = arith.constant 0 : index
    %29 = vector.load %arg6[%c0_14, %c0_15] : memref<1x32xf32, #tpu.memory_space<vmem>>, vector<1x32xf32>
    %30 = vector.broadcast %29 : vector<1x32xf32> to vector<16x32xf32>
    %31 = arith.addf %28, %30 : vector<16x32xf32>
    %c0_16 = arith.constant 0 : index
    %c0_17 = arith.constant 0 : index
    %32 = vector.load %arg7[%c0_16, %c0_17] : memref<16x32xf32, #tpu.memory_space<vmem>>, vector<16x32xf32>
    tpu.vector_store %arg7[%c0_16, %c0_17], %31 {strides = array<i32>} : memref<16x32xf32, #tpu.memory_space<vmem>>, vector<16x32xf32>,
    return
  }
  func.func @transform_0(%arg0: i32) -> (i32, i32) {
    %c0_i32 = arith.constant 0 : i32
    %c0_i32_0 = arith.constant 0 : i32
    return %arg0, %c0_i32 : i32, i32
  }
  func.func @transform_1(%arg0: i32) -> (i32, i32) {
    %c0_i32 = arith.constant 0 : i32
    %c0_i32_0 = arith.constant 0 : i32
    %c0_i32_1 = arith.constant 0 : i32
    return %c0_i32, %c0_i32_0 : i32, i32
  }
  func.func @transform_2(%arg0: i32) -> (i32, i32) {
    %c0_i32 = arith.constant 0 : i32
    %c0_i32_0 = arith.constant 0 : i32
    %c0_i32_1 = arith.constant 0 : i32
    return %c0_i32, %c0_i32_0 : i32, i32
  }
  func.func @transform_3(%arg0: i32) -> (i32, i32) {
    %c0_i32 = arith.constant 0 : i32
    %c0_i32_0 = arith.constant 0 : i32
    return %arg0, %c0_i32 : i32, i32
  }
  func.func @transform_4(%arg0: i32) -> (i32, i32) {
    %c0_i32 = arith.constant 0 : i32
    %c0_i32_0 = arith.constant 0 : i32
    %c0_i32_1 = arith.constant 0 : i32
    return %c0_i32, %c0_i32_0 : i32, i32
  }
  func.func @transform_5(%arg0: i32) -> (i32, i32) {
    %c0_i32 = arith.constant 0 : i32
    %c0_i32_0 = arith.constant 0 : i32
    %c0_i32_1 = arith.constant 0 : i32
    return %c0_i32, %c0_i32_0 : i32, i32
  }
  func.func @transform_6(%arg0: i32) -> (i32, i32) {
    %c0_i32 = arith.constant 0 : i32
    %c0_i32_0 = arith.constant 0 : i32
    return %arg0, %c0_i32 : i32, i32
  }
}

</mosaic_0001>

<llo_original>
// kernel: tpu_custom_call.1
$region0: #{tpu_custom_call.1}
  #allocation0 [shape = 'u32[]', space=smem, size = 0x4, offset = 0x4, fixed_abs, tag = 'smem constant byte address 0x4 - core index']
  #allocation1 [shape = 'u32[144,128]{1,0:T(1,128)}', space=vmem, size = 0x12000, scoped, tag = 'internal scratch']
  %s0 = inlined_call_operand.vmem [shape: f32[16,128], index: 0, kind: input, shape index: {}]
  %s1 = inlined_call_operand.vmem [shape: f32[128,32], index: 1, kind: input, shape index: {}]
  %s2 = inlined_call_operand.vmem [shape: f32[1,32], index: 2, kind: input, shape index: {}]
  %s3 = inlined_call_operand.vmem [shape: f32[16,32], index: 3, kind: input, shape index: {}]
  %s4 = inlined_call_operand.vmem [shape: f32[1,32], index: 4, kind: input, shape index: {}]
  %s5 = inlined_call_operand.vmem [shape: f32[1,32], index: 5, kind: input, shape index: {}]
  %s6 = inlined_call_operand.hbm [shape: f32[16,32], index: 6, kind: output, shape index: {}]
  %s7 = sld [smem:[#allocation0]]
  $region34: #{tpu_custom_call.1} parent=0
    _
  %s9 = ssub.s32 1, %s7
  %s10 = scalar_select 0, %s9, %s7
  $region1: #{tpu_custom_call.1} parent=0
    #allocation2 [shape = 'u8[8192]{0}', space=vmem, size = 0x2000, scoped, tag = 'output window, operand 0, single buffered']
    #allocation3 [shape = 's32[1]{0}', space=sflag, size = 0x4, scoped, tag = 'scoped memory for tpu_custom_call.1']
    %11 = vsyncpa [#allocation3], 0
    // Predicated region
    $region2: #{tpu_custom_call.1} parent=1 // pred_check
      _
    $region3: #{tpu_custom_call.1} parent=1 // pred_check_branch
      %13 = sbr.rel (0) target = $region5
    $region4: #{tpu_custom_call.1} parent=1 // pred_region
      _
    $region5: #{tpu_custom_call.1} parent=1 // pred_fallthru
      _
    // Predicated region
    $region6: #{tpu_custom_call.1} parent=1 // pred_check
      _
    $region7: #{tpu_custom_call.1} parent=1 // pred_check_branch
      %15 = sbr.rel (0) target = $region9
    $region8: #{tpu_custom_call.1} parent=1 // pred_region
      _
    $region9: #{tpu_custom_call.1} parent=1 // pred_fallthru
      _
    // Predicated region
    $region10: #{tpu_custom_call.1} parent=1 // pred_check
      _
    $region11: #{tpu_custom_call.1} parent=1 // pred_check_branch
      %17 = sbr.rel (0) target = $region13
    $region12: #{tpu_custom_call.1} parent=1 // pred_region
      _
    $region13: #{tpu_custom_call.1} parent=1 // pred_fallthru
      _
    // Predicated region
    $region14: #{tpu_custom_call.1} parent=1 // pred_check
      _
    $region15: #{tpu_custom_call.1} parent=1 // pred_check_branch
      %19 = sbr.rel (0) target = $region17
    $region16: #{tpu_custom_call.1} parent=1 // pred_region
      _
    $region17: #{tpu_custom_call.1} parent=1 // pred_fallthru
      _
    // Predicated region
    $region18: #{tpu_custom_call.1} parent=1 // pred_check
      _
    $region19: #{tpu_custom_call.1} parent=1 // pred_check_branch
      %21 = sbr.rel (0) target = $region21
    $region20: #{tpu_custom_call.1} parent=1 // pred_region
      _
    $region21: #{tpu_custom_call.1} parent=1 // pred_fallthru
      _
    // Predicated region
    $region22: #{tpu_custom_call.1} parent=1 // pred_check
      _
    $region23: #{tpu_custom_call.1} parent=1 // pred_check_branch
      %23 = sbr.rel (0) target = $region25
    $region24: #{tpu_custom_call.1} parent=1 // pred_region
      _
    $region25: #{tpu_custom_call.1} parent=1 // pred_fallthru
      _
    %v24 = vld [vmem:[%s0] sm:$0xff]
    %v25 = vld [vmem:[%s0 + $0x8] sm:$0xff]
    %v26 = vld [vmem:[%s1] sm:$0xff]
    %v27 = vld [vmem:[%s1 + $0x8] sm:$0xff]
    %v28 = vld [vmem:[%s1 + $0x10] sm:$0xff]
    %v29 = vld [vmem:[%s1 + $0x18] sm:$0xff]
    %v30 = vld [vmem:[%s1 + $0x20] sm:$0xff]
    %v31 = vld [vmem:[%s1 + $0x28] sm:$0xff]
    %v32 = vld [vmem:[%s1 + $0x30] sm:$0xff]
    %v33 = vld [vmem:[%s1 + $0x38] sm:$0xff]
    %v34 = vld [vmem:[%s1 + $0x40] sm:$0xff]
    %v35 = vld [vmem:[%s1 + $0x48] sm:$0xff]
    %v36 = vld [vmem:[%s1 + $0x50] sm:$0xff]
    %v37 = vld [vmem:[%s1 + $0x58] sm:$0xff]
    %v38 = vld [vmem:[%s1 + $0x60] sm:$0xff]
    %v39 = vld [vmem:[%s1 + $0x68] sm:$0xff]
    %v40 = vld [vmem:[%s1 + $0x70] sm:$0xff]
    %v41 = vld [vmem:[%s1 + $0x78] sm:$0xff]
    %v42 = vld [vmem:[%s2] sm:$0x1]
    %v44 = vlaneseq
    %v45 = vshrl.u32 %v44, 7
    %v46 = vsub.s32 0, %v45
    %v47 = vrot.slane %v42, %v46
    %49 = vmatprep.subr.mxu0 0.0
    %50 = vmatpush1.msra.mxu0 %v26
    %51 = vmatprep.subr.mxu0 0.0
    %52 = vmatpush1.msra.mxu0 %v27
    %53 = vmatprep.subr.mxu0 0.0
    %54 = vmatpush1.msra.mxu0 %v28
    %55 = vmatprep.subr.mxu0 0.0
    %56 = vmatpush1.msra.mxu0 %v29
    %57 = vmatprep.subr.mxu0 0.0
    %58 = vmatpush1.msra.mxu0 %v30
    %59 = vmatprep.subr.mxu0 0.0
    %60 = vmatpush1.msra.mxu0 %v31
    %61 = vmatprep.subr.mxu0 0.0
    %62 = vmatpush1.msra.mxu0 %v32
    %63 = vmatprep.subr.mxu0 0.0
    %64 = vmatpush1.msra.mxu0 %v33
    %65 = vmatprep.subr.mxu0 0.0
    %66 = vmatpush1.msra.mxu0 %v34
    %67 = vmatprep.subr.mxu0 0.0
    %68 = vmatpush1.msra.mxu0 %v35
    %69 = vmatprep.subr.mxu0 0.0
    %70 = vmatpush1.msra.mxu0 %v36
    %71 = vmatprep.subr.mxu0 0.0
    %72 = vmatpush1.msra.mxu0 %v37
    %73 = vmatprep.subr.mxu0 0.0
    %74 = vmatpush1.msra.mxu0 %v38
    %75 = vmatprep.subr.mxu0 0.0
    %76 = vmatpush1.msra.mxu0 %v39
    %77 = vmatprep.subr.mxu0 0.0
    %78 = vmatpush1.msra.mxu0 %v40
    %79 = vmatprep.subr.mxu0 0.0
    %80 = vmatpush1.msra.mxu0 %v41
    %81 = vmatprep.subr.mxu0 0.0
    %82 = vmatpush1.msra.mxu0 0.0
    %83 = vmatprep.subr.mxu0 0.0
    %84 = vmatpush1.msra.mxu0 0.0
    %85 = vmatprep.subr.mxu0 0.0
    %86 = vmatpush1.msra.mxu0 0.0
    %87 = vmatprep.subr.mxu0 0.0
    %88 = vmatpush1.msra.mxu0 0.0
    %89 = vmatprep.subr.mxu0 0.0
    %90 = vmatpush1.msra.mxu0 0.0
    %91 = vmatprep.subr.mxu0 0.0
    %92 = vmatpush1.msra.mxu0 0.0
    %93 = vmatprep.subr.mxu0 0.0
    %94 = vmatpush1.msra.mxu0 0.0
    %95 = vmatprep.subr.mxu0 0.0
    %96 = vmatpush1.msra.mxu0 0.0
    %97 = vmatprep.subr.mxu0 0.0
    %98 = vmatpush1.msra.mxu0 0.0
    %99 = vmatprep.subr.mxu0 0.0
    %100 = vmatpush1.msra.mxu0 0.0
    %101 = vmatprep.subr.mxu0 0.0
    %102 = vmatpush1.msra.mxu0 0.0
    %103 = vmatprep.subr.mxu0 0.0
    %104 = vmatpush1.msra.mxu0 0.0
    %105 = vmatprep.subr.mxu0 0.0
    %106 = vmatpush1.msra.mxu0 0.0
    %107 = vmatprep.subr.mxu0 0.0
    %108 = vmatpush1.msra.mxu0 0.0
    %109 = vmatprep.subr.mxu0 0.0
    %110 = vmatpush1.msra.mxu0 0.0
    %111 = vmatprep.subr.mxu0 0.0
    %112 = vmatpush1.msra.mxu0 0.0
    %113 = vmatprep.mubr.f32.mxu0 0.0
    %114 = vmatmul.mubr.f32.gmra.mrb[0].mxu0 %v24
    %v115 = vpop.f32.mrb[0].mxu0
    %v116 = vadd.f32 %v47, %v115
    %v117 = vpop.f32.mrb[0].mxu0
    %118 = vmatprep.mubr.f32.mxu0 0.0
    %119 = vmatmul.mubr.f32.gmra.mrb[0].mxu0 %v25
    %v120 = vpop.f32.mrb[0].mxu0
    %v121 = vadd.f32 %v47, %v120
    %v122 = vpop.f32.mrb[0].mxu0
    %123 = vdwg.mxu0
    %v124 = vld [vmem:[%s3] sm:$0xff]
    %v125 = vld [vmem:[%s3 + $0x8] sm:$0xff]
    %v126 = vadd.f32 %v116, %v124
    %v127 = vadd.f32 %v121, %v125
    %vm128 = vcmask 261120
    %v129 = vsel %vm128, %v126, 0.0
    %130 = vadd.xlane.f32.xlu0 %v129
    %v131 = vpop.xlane.xlu0 %130
    %v132 = vsel %vm128, %v127, 0.0
    %133 = vadd.xlane.f32.xlu0 %v132
    %v134 = vpop.xlane.xlu0 %133
    %v135 = vrcp.pop 32.0
    %v136 = vmul.f32 %v131, %v135
    %v137 = vmul.f32 %v134, %v135
    %v138 = vsub.f32 %v126, %v136
    %v139 = vsub.f32 %v127, %v137
    %v140 = vmul.f32 %v138, %v138
    %v141 = vmul.f32 %v139, %v139
    %v142 = vsel %vm128, %v140, 0.0
    %143 = vadd.xlane.f32.xlu0 %v142
    %v144 = vpop.xlane.xlu0 %143
    %v145 = vsel %vm128, %v141, 0.0
    %146 = vadd.xlane.f32.xlu0 %v145
    %v147 = vpop.xlane.xlu0 %146
    %v148 = vmul.f32 %v144, %v135
    %v149 = vmul.f32 %v147, %v135
    %v150 = vadd.f32 %v148, 1e-12
    %v151 = vadd.f32 %v149, 1e-12
    %v152 = vrsqrt.pop %v150
    %v153 = vrsqrt.pop %v151
    %v154 = vmul.f32 %v138, %v152
    %v155 = vmul.f32 %v139, %v153
    %v156 = vld [vmem:[%s4] sm:$0x1]
    %v158 = vlaneseq
    %v159 = vshrl.u32 %v158, 7
    %v160 = vsub.s32 0, %v159
    %v161 = vrot.slane %v156, %v160
    %v163 = vmul.f32 %v154, %v161
    %v164 = vmul.f32 %v155, %v161
    %v165 = vld [vmem:[%s5] sm:$0x1]
    %v167 = vlaneseq
    %v168 = vshrl.u32 %v167, 7
    %v169 = vsub.s32 0, %v168
    %v170 = vrot.slane %v165, %v169
    %v172 = vadd.f32 %v163, %v170
    %v173 = vadd.f32 %v164, %v170
    %174 = vst.msk [vmem:[#allocation2] sm:$0xff] %vm128, %v172
    %175 = vst.msk [vmem:[#allocation2 + $0x8] sm:$0xff] %vm128, %v173
    // Predicated region
    $region26: #{tpu_custom_call.1} parent=1 // pred_check
      _
    $region27: #{tpu_custom_call.1} parent=1 // pred_check_branch
      %177 = sbr.rel (0) target = $region29
    $region28: #{tpu_custom_call.1} parent=1 // pred_region
      %s179 = ssub.s32 256, 256
      %180 = vsyncadd [#allocation3], %s179
      %s181 = sshll.u32 [#allocation2], 4
      %s182 = int_to_ptr.vmem [resolvable:$true] %s181
      %187 = dma.vmem_to_hbm [thread:$0]  %s182, 256, %s6, [#allocation3], 128, 128, 8
    $region29: #{tpu_custom_call.1} parent=1 // pred_fallthru
      _
    // Predicated region
    $region30: #{tpu_custom_call.1} parent=1 // pred_check
      _
    $region31: #{tpu_custom_call.1} parent=1 // pred_check_branch
      %189 = sbr.rel (0) target = $region33
    $region32: #{tpu_custom_call.1} parent=1 // pred_region
      %190 = dma.done [#allocation3], 256
    $region33: #{tpu_custom_call.1} parent=1 // pred_fallthru
      _
    %191 = vsyncpa [#allocation3], 1

</llo_original>
